<compile_context>
chip_gen: v6e
topology: v6e:2x2x1
jax: 0.10.0
libtpu: 0.0.40
codegen_flags: <defaults>
</compile_context>

<pallas_src>
import functools

import jax
import jax.numpy as jnp
from jax.experimental import pallas as pl
from jax.experimental.pallas import tpu as pltpu


# ---------------------------------------------------------------------------
# Model configuration (small, consistent with the module's __init__ semantics)
# ---------------------------------------------------------------------------
N_USERS = 32
N_ITEMS = 24
USER_LAYERS = [64, 32]          # userLayers  (last == itemLayers last)
ITEM_LAYERS = [64, 32]          # itemLayers
FC_LAYERS = [64, 32, 16]        # fcLayers (fcLayers[0] must be even)

HALF_FC0 = FC_LAYERS[0] // 2    # width of userFC / itemFC outputs
FC1 = FC_LAYERS[1]
DMF_DIM = USER_LAYERS[-1]       # dmfVector width
MLP_DIM = FC_LAYERS[-1]         # mlpVector width

AC_ROWS = 2 * (DMF_DIM + FC1)   # 128 feature rows produced by the gather matmul
NK = N_USERS + N_ITEMS          # 56 one-hot "keys" (user rows then item rows)

BATCH = 512                     # demo batch
B_TILE = 256                    # rows (lanes) per grid step; multiple of 128.
                                # For large batches sweep 1024..4096, keeping
                                # >=2 grid steps so v7x can use both TCs.


# ---------------------------------------------------------------------------
# Packed "misc" column layout (each field starts on an 8-sublane boundary)
# ---------------------------------------------------------------------------
def _pack_col(widths, gran=8):
    offs, cur = [], 0
    for w in widths:
        offs.append(cur)
        cur += -(-w // gran) * gran
    return offs, cur


(OFF_BF1, OFF_WD, OFF_WM, OFF_FB), MISC_ROWS = _pack_col([MLP_DIM, DMF_DIM, MLP_DIM, 1])


# ---------------------------------------------------------------------------
# Fused Pallas kernel: whole CFNet forward for one batch tile (batch on lanes)
# ---------------------------------------------------------------------------
def cfnet_kernel(idx_ref, tT_ref, wf1_ref, misc_ref, o_ref):
    f32 = jnp.float32
    bt = idx_ref.shape[1]                                  # batch lanes in tile

    idx = idx_ref[...]                                     # (2, Bt) int32
    u_idx = idx[0:1, :]                                    # (1, Bt)
    i_idx = idx[1:2, :] + N_USERS                          # (1, Bt), item keys offset

    # In-kernel embedding gather: one-hot (keys x batch) matmul against the
    # precomputed block-diagonal table.  Column b selects A_table[user_b] into
    # rows 0..63 and C_table[item_b] into rows 64..127.
    sub = jax.lax.broadcasted_iota(jnp.int32, (NK, bt), 0)
    onehot_t = jnp.logical_or(sub == u_idx, sub == i_idx).astype(f32)   # (NK, Bt)
    ac = jnp.dot(tT_ref[...], onehot_t, preferred_element_type=f32)     # (128, Bt)

    # ---- DMF tower (two Linears already folded into the table) ----
    u = jnp.maximum(ac[0:DMF_DIM, :], 0.0)                               # (32, Bt)
    mlp_u = ac[DMF_DIM:DMF_DIM + FC1, :]                                 # (32, Bt)
    v = jnp.maximum(ac[DMF_DIM + FC1:2 * DMF_DIM + FC1, :], 0.0)         # (32, Bt)
    mlp_i = ac[2 * DMF_DIM + FC1:, :]                                    # (32, Bt)
    dmf = u * v

    # ---- MLP tower (userFC/itemFC folded into fcs[0]; biases in the table) --
    mlp0 = jnp.maximum(mlp_u + mlp_i, 0.0)                               # (32, Bt)

    b_f1 = misc_ref[OFF_BF1:OFF_BF1 + MLP_DIM, :]                        # (16, 1)
    w_dmf = misc_ref[OFF_WD:OFF_WD + DMF_DIM, :]                         # (32, 1)
    w_mlp = misc_ref[OFF_WM:OFF_WM + MLP_DIM, :]                         # (16, 1)
    finb = misc_ref[OFF_FB:OFF_FB + 1, :]                                # (1, 1)

    mlp = jnp.maximum(
        jnp.dot(wf1_ref[...], mlp0, preferred_element_type=f32) + b_f1, 0.0)   # (16, Bt)

    # ---- final Linear(DMF+MLP, 1) + Sigmoid as VPU mul + sublane reductions --
    logit = (jnp.sum(dmf * w_dmf, axis=0, keepdims=True)
             + jnp.sum(mlp * w_mlp, axis=0, keepdims=True)
             + finb)                                                     # (1, Bt)
    o_ref[...] = 1.0 / (1.0 + jnp.exp(-logit))                           # lane-dense store


# ---------------------------------------------------------------------------
# One-time parameter preparation (algebraic folds, table precompute, packing)
# ---------------------------------------------------------------------------
def prepare_params(p, user_matrix, item_matrix):
    t = jnp.transpose
    f32 = jnp.float32

    # userModel: Linear(nItems, uL0), Linear(uL0, uL1), ReLU  -> one matrix
    W_u = t(p["uW0"]) @ t(p["uW1"])                    # (nItems, DMF_DIM)
    b_u = p["ub0"] @ t(p["uW1"]) + p["ub1"]            # (DMF_DIM,)
    # itemModel
    W_v = t(p["iW0"]) @ t(p["iW1"])                    # (nUsers, DMF_DIM)
    b_v = p["ib0"] @ t(p["iW1"]) + p["ib1"]            # (DMF_DIM,)

    # userFC / itemFC folded into fcs[0] (no nonlinearity in between)
    fW0T = t(p["fW0"])                                 # (FC0, FC1)
    Wu_mlp = t(p["ufW"]) @ fW0T[:HALF_FC0, :]          # (nItems, FC1)
    Wi_mlp = t(p["ifW"]) @ fW0T[HALF_FC0:, :]          # (nUsers, FC1)
    b_mlp = (p["ufb"] @ fW0T[:HALF_FC0, :]
             + p["ifb"] @ fW0T[HALF_FC0:, :] + p["fb0"])

    Wui = jnp.concatenate([W_u, Wu_mlp], axis=1)       # (nItems, DMF_DIM + FC1)
    Wii = jnp.concatenate([W_v, Wi_mlp], axis=1)       # (nUsers, DMF_DIM + FC1)

    # userMatrix / itemMatrix are fixed buffers -> fold them in as per-user /
    # per-item feature tables (biases folded; b_mlp attached only once).
    A_table = user_matrix @ Wui + jnp.concatenate([b_u, b_mlp])[None, :]              # (nUsers, 64)
    C_table = item_matrix @ Wii + jnp.concatenate([b_v, jnp.zeros_like(b_mlp)])[None, :]  # (nItems, 64)

    # Block-diagonal gather table, stored transposed: (features=128, keys=56)
    half = DMF_DIM + FC1
    T = jnp.zeros((NK, AC_ROWS), f32)
    T = T.at[:N_USERS, :half].set(A_table)
    T = T.at[N_USERS:, half:].set(C_table)
    T_T = t(T)                                         # (128, 56)

    Wf1_T = p["fW1"].astype(f32)                       # (MLP_DIM, FC1) — already "W^T" form

    misc = jnp.zeros((MISC_ROWS, 1), f32)
    misc = misc.at[OFF_BF1:OFF_BF1 + MLP_DIM, 0].set(p["fb1"])
    misc = misc.at[OFF_WD:OFF_WD + DMF_DIM, 0].set(p["finW"][0, :DMF_DIM])
    misc = misc.at[OFF_WM:OFF_WM + MLP_DIM, 0].set(p["finW"][0, DMF_DIM:])
    misc = misc.at[OFF_FB, 0].set(p["finb"][0])

    return {"T_T": T_T, "Wf1_T": Wf1_T, "misc": misc}


# ---------------------------------------------------------------------------
# Jitted forward: everything (gather included) in one pallas_call
# ---------------------------------------------------------------------------
@functools.partial(jax.jit, static_argnames=("b_tile",))
def cfnet_forward(user, item, prepped, b_tile=B_TILE):
    B = user.shape[0]
    n_tiles = -(-B // b_tile)
    B_pad = n_tiles * b_tile

    idx = jnp.stack([user.astype(jnp.int32), item.astype(jnp.int32)], axis=0)  # (2, B)
    if B_pad != B:
        idx = jnp.pad(idx, ((0, 0), (0, B_pad - B)))   # pad rows use id 0; sliced off below

    out = pl.pallas_call(
        cfnet_kernel,
        out_shape=jax.ShapeDtypeStruct((1, B_pad), jnp.float32),
        grid=(n_tiles,),
        in_specs=[
            pl.BlockSpec((2, b_tile), lambda i: (0, i)),          # indices, lane-dense
            pl.BlockSpec((AC_ROWS, NK), lambda i: (0, 0)),        # T_T, resident
            pl.BlockSpec((MLP_DIM, FC1), lambda i: (0, 0)),       # Wf1_T, resident
            pl.BlockSpec((MISC_ROWS, 1), lambda i: (0, 0)),       # misc column, resident
        ],
        out_specs=pl.BlockSpec((1, b_tile), lambda i: (0, i)),    # lane-dense output
        compiler_params=pltpu.CompilerParams(dimension_semantics=("parallel",)),
    )(idx, prepped["T_T"], prepped["Wf1_T"], prepped["misc"])

    return out[0, :B][:, None]                                    # (B, 1)


# ---------------------------------------------------------------------------
# Deterministic parameter init (synthetic; no checkpoint loading)
# ---------------------------------------------------------------------------
def init_params(key):
    shapes = {
        # userModel: Linear(nItems, uL0), Linear(uL0, uL1)
        "uW0": (USER_LAYERS[0], N_ITEMS), "ub0": (USER_LAYERS[0],),
        "uW1": (USER_LAYERS[1], USER_LAYERS[0]), "ub1": (USER_LAYERS[1],),
        # itemModel: Linear(nUsers, iL0), Linear(iL0, iL1)
        "iW0": (ITEM_LAYERS[0], N_USERS), "ib0": (ITEM_LAYERS[0],),
        "iW1": (ITEM_LAYERS[1], ITEM_LAYERS[0]), "ib1": (ITEM_LAYERS[1],),
        # userFC / itemFC
        "ufW": (HALF_FC0, N_ITEMS), "ufb": (HALF_FC0,),
        "ifW": (HALF_FC0, N_USERS), "ifb": (HALF_FC0,),
        # fcs
        "fW0": (FC_LAYERS[1], FC_LAYERS[0]), "fb0": (FC_LAYERS[1],),
        "fW1": (FC_LAYERS[2], FC_LAYERS[1]), "fb1": (FC_LAYERS[2],),
        # final
        "finW": (1, DMF_DIM + MLP_DIM), "finb": (1,),
    }
    params = {}
    keys = jax.random.split(key, len(shapes))
    for k, (name, shp) in zip(keys, sorted(shapes.items())):
        params[name] = 0.1 * jax.random.normal(k, shp, dtype=jnp.float32)
    return params


def reference_forward(user, item, user_matrix, item_matrix, p):
    """Pure-JAX reference mirroring the PyTorch forward (unfused)."""
    ui = user_matrix[user, :]
    ii = item_matrix[item, :]
    relu = lambda x: jnp.maximum(x, 0.0)
    u = ui @ p["uW0"].T + p["ub0"]
    u = relu(u @ p["uW1"].T + p["ub1"])
    v = ii @ p["iW0"].T + p["ib0"]
    v = relu(v @ p["iW1"].T + p["ib1"])
    dmf = u * v
    uf = ui @ p["ufW"].T + p["ufb"]
    itf = ii @ p["ifW"].T + p["ifb"]
    mlp = jnp.concatenate([uf, itf], axis=-1)
    mlp = relu(mlp @ p["fW0"].T + p["fb0"])
    mlp = relu(mlp @ p["fW1"].T + p["fb1"])
    y = jnp.concatenate([dmf, mlp], axis=-1)
    y = y @ p["finW"].T + p["finb"]
    return jax.nn.sigmoid(y)


if __name__ == "__main__":
    key = jax.random.PRNGKey(0)
    k_mat_u, k_mat_i, k_params, k_user, k_item = jax.random.split(key, 5)

    # Interaction matrices (registered buffers in the PyTorch module)
    user_matrix = jax.random.uniform(k_mat_u, (N_USERS, N_ITEMS), dtype=jnp.float32)
    item_matrix = jax.random.uniform(k_mat_i, (N_ITEMS, N_USERS), dtype=jnp.float32)

    params = init_params(k_params)
    prepped = prepare_params(params, user_matrix, item_matrix)   # one-time fold/layout prep

    user = jax.random.randint(k_user, (BATCH,), 0, N_USERS)
    item = jax.random.randint(k_item, (BATCH,), 0, N_ITEMS)

    out = cfnet_forward(user, item, prepped, b_tile=B_TILE)
    out = jax.block_until_ready(out)

    ref = reference_forward(user, item, user_matrix, item_matrix, params)
    assert out.shape == (BATCH, 1)
    # Algebraic folds + table precompute re-associate f32 sums -> allow tiny drift.
    assert jnp.allclose(out, ref, atol=1e-4, rtol=1e-4), (out, ref)

    print("KERNEL_OK")
</pallas_src>

<mosaic_0001>
module attributes {stable_mosaic.version = 11 : i64} {
  func.func @cfnet_kernel(%arg0: i32, %arg1: memref<2x256xi32, #tpu.memory_space<vmem>>, %arg2: memref<128x56xf32, #tpu.memory_space<vmem>>, %arg3: memref<16x32xf32, #tpu.memory_space<vmem>>, %arg4: memref<72x1xf32, #tpu.memory_space<vmem>>, %arg5: memref<1x256xf32, #tpu.memory_space<vmem>>) attributes {dimension_semantics = [#tpu.dimension_semantics<parallel>], iteration_bounds = array<i64: 2>, scalar_prefetch = 0 : i64, scratch_operands = 0 : i64, tpu.core_type = #tpu.core_type<tc>, window_params = [{transform_indices = @transform_0, window_bounds = array<i64: 2, 256>}, {pipeline_mode = #tpu.pipeline_mode<synchronous>, transform_indices = @transform_1, window_bounds = array<i64: 128, 56>}, {pipeline_mode = #tpu.pipeline_mode<synchronous>, transform_indices = @transform_2, window_bounds = array<i64: 16, 32>}, {pipeline_mode = #tpu.pipeline_mode<synchronous>, transform_indices = @transform_3, window_bounds = array<i64: 72, 1>}, {transform_indices = @transform_4, window_bounds = array<i64: 1, 256>}]} {
    %c0 = arith.constant 0 : index
    %c0_0 = arith.constant 0 : index
    %0 = vector.load %arg1[%c0, %c0_0] : memref<2x256xi32, #tpu.memory_space<vmem>>, vector<2x256xi32>
    %1 = vector.extract_strided_slice %0 {offsets = [0, 0], sizes = [1, 256], strides = [1, 1]} : vector<2x256xi32> to vector<1x256xi32>
    %2 = vector.extract_strided_slice %0 {offsets = [1, 0], sizes = [1, 256], strides = [1, 1]} : vector<2x256xi32> to vector<1x256xi32>
    %c32_i32 = arith.constant 32 : i32
    %3 = vector.broadcast %c32_i32 : i32 to vector<1x256xi32>
    %4 = arith.addi %2, %3 : vector<1x256xi32>
    %5 = tpu.iota {dimensions = array<i32: 0>} : vector<56x256xi32>
    %6 = vector.broadcast %1 : vector<1x256xi32> to vector<56x256xi32>
    %7 = arith.cmpi eq, %5, %6 : vector<56x256xi32>
    %8 = vector.broadcast %4 : vector<1x256xi32> to vector<56x256xi32>
    %9 = arith.cmpi eq, %5, %8 : vector<56x256xi32>
    %10 = arith.ori %7, %9 : vector<56x256xi1>
    %11 = arith.extui %10 : vector<56x256xi1> to vector<56x256xi32>
    %12 = arith.sitofp %11 : vector<56x256xi32> to vector<56x256xf32>
    %c0_1 = arith.constant 0 : index
    %c0_2 = arith.constant 0 : index
    %13 = vector.load %arg2[%c0_1, %c0_2] : memref<128x56xf32, #tpu.memory_space<vmem>>, vector<128x56xf32>
    %cst = arith.constant dense<0.000000e+00> : vector<128x256xf32>
    %14 = tpu.matmul %13, %12, %cst {dimension_numbers = #tpu.dot_dimension_numbers<[1], [0], [0], [1], [0, 0, 1, 1], [], []>} : vector<128x56xf32>, vector<56x256xf32>, vector<128x256xf32> -> vector<128x256xf32>
    %15 = vector.extract_strided_slice %14 {offsets = [0, 0], sizes = [32, 256], strides = [1, 1]} : vector<128x256xf32> to vector<32x256xf32>
    %cst_3 = arith.constant 0.000000e+00 : f32
    %16 = vector.broadcast %cst_3 : f32 to vector<32x256xf32>
    %17 = arith.maximumf %15, %16 : vector<32x256xf32>
    %18 = vector.extract_strided_slice %14 {offsets = [32, 0], sizes = [32, 256], strides = [1, 1]} : vector<128x256xf32> to vector<32x256xf32>
    %19 = vector.extract_strided_slice %14 {offsets = [64, 0], sizes = [32, 256], strides = [1, 1]} : vector<128x256xf32> to vector<32x256xf32>
    %cst_4 = arith.constant 0.000000e+00 : f32
    %20 = vector.broadcast %cst_4 : f32 to vector<32x256xf32>
    %21 = arith.maximumf %19, %20 : vector<32x256xf32>
    %22 = vector.extract_strided_slice %14 {offsets = [96, 0], sizes = [32, 256], strides = [1, 1]} : vector<128x256xf32> to vector<32x256xf32>
    %23 = arith.mulf %17, %21 : vector<32x256xf32>
    %24 = arith.addf %18, %22 : vector<32x256xf32>
    %cst_5 = arith.constant 0.000000e+00 : f32
    %25 = vector.broadcast %cst_5 : f32 to vector<32x256xf32>
    %26 = arith.maximumf %24, %25 : vector<32x256xf32>
    %c0_6 = arith.constant 0 : index
    %c0_7 = arith.constant 0 : index
    %27 = vector.load %arg4[%c0_6, %c0_7] : memref<72x1xf32, #tpu.memory_space<vmem>>, vector<16x1xf32>
    %c16 = arith.constant 16 : index
    %c0_8 = arith.constant 0 : index
    %28 = vector.load %arg4[%c16, %c0_8] : memref<72x1xf32, #tpu.memory_space<vmem>>, vector<32x1xf32>
    %c48 = arith.constant 48 : index
    %c0_9 = arith.constant 0 : index
    %29 = vector.load %arg4[%c48, %c0_9] : memref<72x1xf32, #tpu.memory_space<vmem>>, vector<16x1xf32>
    %c64 = arith.constant 64 : index
    %c0_10 = arith.constant 0 : index
    %30 = vector.load %arg4[%c64, %c0_10] : memref<72x1xf32, #tpu.memory_space<vmem>>, vector<1x1xf32>
    %c0_11 = arith.constant 0 : index
    %c0_12 = arith.constant 0 : index
    %31 = vector.load %arg3[%c0_11, %c0_12] : memref<16x32xf32, #tpu.memory_space<vmem>>, vector<16x32xf32>
    %cst_13 = arith.constant dense<0.000000e+00> : vector<16x256xf32>
    %32 = tpu.matmul %31, %26, %cst_13 {dimension_numbers = #tpu.dot_dimension_numbers<[1], [0], [0], [1], [0, 0, 1, 1], [], []>} : vector<16x32xf32>, vector<32x256xf32>, vector<16x256xf32> -> vector<16x256xf32>
    %33 = vector.broadcast %27 : vector<16x1xf32> to vector<16x256xf32>
    %34 = arith.addf %32, %33 : vector<16x256xf32>
    %cst_14 = arith.constant 0.000000e+00 : f32
    %35 = vector.broadcast %cst_14 : f32 to vector<16x256xf32>
    %36 = arith.maximumf %34, %35 : vector<16x256xf32>
    %37 = vector.broadcast %28 : vector<32x1xf32> to vector<32x256xf32>
    %38 = arith.mulf %23, %37 : vector<32x256xf32>
    %cst_15 = arith.constant dense<0.000000e+00> : vector<256xf32>
    %39 = vector.multi_reduction <add>, %38, %cst_15 [0] : vector<32x256xf32> to vector<256xf32>
    %40 = vector.shape_cast %39 : vector<256xf32> to vector<1x256xf32>
    %41 = vector.broadcast %29 : vector<16x1xf32> to vector<16x256xf32>
    %42 = arith.mulf %36, %41 : vector<16x256xf32>
    %cst_16 = arith.constant dense<0.000000e+00> : vector<256xf32>
    %43 = vector.multi_reduction <add>, %42, %cst_16 [0] : vector<16x256xf32> to vector<256xf32>
    %44 = vector.shape_cast %43 : vector<256xf32> to vector<1x256xf32>
    %45 = arith.addf %40, %44 : vector<1x256xf32>
    %46 = vector.broadcast %30 : vector<1x1xf32> to vector<1x256xf32>
    %47 = arith.addf %45, %46 : vector<1x256xf32>
    %cst_17 = arith.constant 0.000000e+00 : f32
    %48 = vector.broadcast %cst_17 : f32 to vector<1x256xf32>
    %49 = arith.subf %48, %47 : vector<1x256xf32>
    %50 = math.exp %49 : vector<1x256xf32>
    %cst_18 = arith.constant 1.000000e+00 : f32
    %51 = vector.broadcast %cst_18 : f32 to vector<1x256xf32>
    %52 = arith.addf %51, %50 : vector<1x256xf32>
    %cst_19 = arith.constant 1.000000e+00 : f32
    %53 = vector.broadcast %cst_19 : f32 to vector<1x256xf32>
    %54 = arith.divf %53, %52 : vector<1x256xf32>
    %c0_20 = arith.constant 0 : index
    %c0_21 = arith.constant 0 : index
    %55 = vector.load %arg5[%c0_20, %c0_21] : memref<1x256xf32, #tpu.memory_space<vmem>>, vector<1x256xf32>
    tpu.vector_store %arg5[%c0_20, %c0_21], %54 {strides = array<i32>} : memref<1x256xf32, #tpu.memory_space<vmem>>, vector<1x256xf32>,
    return
  }
  func.func @transform_0(%arg0: i32) -> (i32, i32) {
    %c0_i32 = arith.constant 0 : i32
    %c0_i32_0 = arith.constant 0 : i32
    return %c0_i32, %arg0 : i32, i32
  }
  func.func @transform_1(%arg0: i32) -> (i32, i32) {
    %c0_i32 = arith.constant 0 : i32
    %c0_i32_0 = arith.constant 0 : i32
    %c0_i32_1 = arith.constant 0 : i32
    return %c0_i32, %c0_i32_0 : i32, i32
  }
  func.func @transform_2(%arg0: i32) -> (i32, i32) {
    %c0_i32 = arith.constant 0 : i32
    %c0_i32_0 = arith.constant 0 : i32
    %c0_i32_1 = arith.constant 0 : i32
    return %c0_i32, %c0_i32_0 : i32, i32
  }
  func.func @transform_3(%arg0: i32) -> (i32, i32) {
    %c0_i32 = arith.constant 0 : i32
    %c0_i32_0 = arith.constant 0 : i32
    %c0_i32_1 = arith.constant 0 : i32
    return %c0_i32, %c0_i32_0 : i32, i32
  }
  func.func @transform_4(%arg0: i32) -> (i32, i32) {
    %c0_i32 = arith.constant 0 : i32
    %c0_i32_0 = arith.constant 0 : i32
    return %c0_i32, %arg0 : i32, i32
  }
}

</mosaic_0001>

<llo_original>
// kernel: cfnet_forward.1
$region0: #{cfnet_forward.1}
  #allocation0 [shape = 'u32[]', space=smem, size = 0x4, offset = 0x4, fixed_abs, tag = 'smem constant byte address 0x4 - core index']
  #allocation1 [shape = 'u32[144,128]{1,0:T(1,128)}', space=vmem, size = 0x12000, scoped, tag = 'internal scratch']
  %s0 = inlined_call_operand.vmem [shape: s32[2,512], index: 0, kind: input, shape index: {}]
  %s1 = inlined_call_operand.vmem [shape: f32[128,56], index: 1, kind: input, shape index: {}]
  %s2 = inlined_call_operand.vmem [shape: f32[16,32], index: 2, kind: input, shape index: {}]
  %s3 = inlined_call_operand.vmem [shape: f32[72,1], index: 3, kind: input, shape index: {}]
  %s4 = inlined_call_operand.hbm [shape: f32[1,512], index: 4, kind: output, shape index: {}]
  %s5 = sld [smem:[#allocation0]]
  $region49: #{cfnet_forward.1} parent=0
    _
  %s7 = ssub.s32 1, %s5
  %s8 = scalar_select 0, %s7, %s5
  $region1: #{cfnet_forward.1} parent=0
    #allocation2 [shape = 'u8[2048]{0}', space=vmem, size = 0x800, scoped, tag = 'output window, operand 0']
    #allocation3 [shape = 's32[2]{0}', space=sflag, size = 0x8, scoped, tag = 'scoped memory for cfnet_forward.1']
    %9 = vsyncpa [#allocation3], 0
    %s10 = scalar_lea.sflag [#allocation3], 1
    %11 = vsyncpa %s10, 0
    loop: start=0, step=1, limit=4
    $region2: #{cfnet_forward.1} parent=1 // loop_pre_header
      _
    $region3: #{cfnet_forward.1} parent=1 // loop_header
      %s13 = sphi 0, %s17
      %p14 = scmp.ge.s32.totalorder %s13, 4
      %s23 = sphi 0, %s25
      %s26 = sphi 0, %s23
      %s27 = sphi 0, %s26
      %s43 = sphi 0, %s27
      %s47 = sphi 0, %s47
      %s49 = sphi 0, %s47
      %s50 = sphi 0, %s49
      %s64 = sphi 0, %s50
      %s68 = sphi 0, %s68
      %s70 = sphi 0, %s68
      %s71 = sphi 0, %s70
      %s85 = sphi 0, %s71
      %s89 = sphi 0, %s89
      %s91 = sphi 0, %s89
      %s92 = sphi 0, %s91
      %s106 = sphi 0, %s92
      %s112 = sphi 0, %s114
      %s115 = sphi 0, %s112
      %s116 = sphi 0, %s115
      %s132 = sphi 0, %s116
    $region4: #{cfnet_forward.1} parent=1 // loop_header_branch
      %16 = sbr.rel (%p14) target = $region8
    $region5: #{cfnet_forward.1} parent=1 // loop_body
      %s18 = ssub.s32 %s13, 1
      %s19 = ssub.s32 %s13, 2
      %s20 = sadd.s32 %s13, 1
      %s21 = ssub.s32 %s13, %s20
      %p22 = scmp.eq.s32.totalorder %s21, 0
      %s24 = sadd.s32 %s23, 1
      %s25 = scalar_select %p22, %s23, %s24
      %p28 = pneg %p22
      %p29 = scmp.eq.s32.totalorder %s13, 1
      %p30 = por %p28, %p29
      %p31 = scmp.ne.s32.totalorder %s23, %s26
      %p32 = scmp.eq.s32.totalorder %s13, 0
      %p33 = por %p31, %p32
      %p34 = scmp.ne.s32.totalorder %s23, %s26
      %p35 = scmp.eq.s32.totalorder %s18, 1
      %p36 = por %p34, %p35
      %p37 = scmp.ne.s32.totalorder %s26, %s27
      %p38 = scmp.eq.s32.totalorder %s18, 0
      %p39 = por %p37, %p38
      %p40 = scmp.ne.s32.totalorder %s26, %s27
      %p41 = scmp.eq.s32.totalorder %s19, 1
      %p42 = por %p40, %p41
      %p44 = scmp.ne.s32.totalorder %s27, %s43
      %p45 = scmp.eq.s32.totalorder %s19, 0
      %p46 = por %p44, %p45
      %s48 = sadd.s32 %s47, 1
      %p51 = scmp.eq.s32.totalorder %s13, 1
      %p52 = scmp.ne.s32.totalorder %s47, %s49
      %p53 = scmp.eq.s32.totalorder %s13, 0
      %p54 = por %p52, %p53
      %p55 = scmp.ne.s32.totalorder %s47, %s49
      %p56 = scmp.eq.s32.totalorder %s18, 1
      %p57 = por %p55, %p56
      %p58 = scmp.ne.s32.totalorder %s49, %s50
      %p59 = scmp.eq.s32.totalorder %s18, 0
      %p60 = por %p58, %p59
      %p61 = scmp.ne.s32.totalorder %s49, %s50
      %p62 = scmp.eq.s32.totalorder %s19, 1
      %p63 = por %p61, %p62
      %p65 = scmp.ne.s32.totalorder %s50, %s64
      %p66 = scmp.eq.s32.totalorder %s19, 0
      %p67 = por %p65, %p66
      %s69 = sadd.s32 %s68, 1
      %p72 = scmp.eq.s32.totalorder %s13, 1
      %p73 = scmp.ne.s32.totalorder %s68, %s70
      %p74 = scmp.eq.s32.totalorder %s13, 0
      %p75 = por %p73, %p74
      %p76 = scmp.ne.s32.totalorder %s68, %s70
      %p77 = scmp.eq.s32.totalorder %s18, 1
      %p78 = por %p76, %p77
      %p79 = scmp.ne.s32.totalorder %s70, %s71
      %p80 = scmp.eq.s32.totalorder %s18, 0
      %p81 = por %p79, %p80
      %p82 = scmp.ne.s32.totalorder %s70, %s71
      %p83 = scmp.eq.s32.totalorder %s19, 1
      %p84 = por %p82, %p83
      %p86 = scmp.ne.s32.totalorder %s71, %s85
      %p87 = scmp.eq.s32.totalorder %s19, 0
      %p88 = por %p86, %p87
      %s90 = sadd.s32 %s89, 1
      %p93 = scmp.eq.s32.totalorder %s13, 1
      %p94 = scmp.ne.s32.totalorder %s89, %s91
      %p95 = scmp.eq.s32.totalorder %s13, 0
      %p96 = por %p94, %p95
      %p97 = scmp.ne.s32.totalorder %s89, %s91
      %p98 = scmp.eq.s32.totalorder %s18, 1
      %p99 = por %p97, %p98
      %p100 = scmp.ne.s32.totalorder %s91, %s92
      %p101 = scmp.eq.s32.totalorder %s18, 0
      %p102 = por %p100, %p101
      %p103 = scmp.ne.s32.totalorder %s91, %s92
      %p104 = scmp.eq.s32.totalorder %s19, 1
      %p105 = por %p103, %p104
      %p107 = scmp.ne.s32.totalorder %s92, %s106
      %p108 = scmp.eq.s32.totalorder %s19, 0
      %p109 = por %p107, %p108
      %s110 = ssub.s32 %s13, %s20
      %p111 = scmp.eq.s32.totalorder %s110, 0
      %s113 = sadd.s32 %s112, 1
      %s114 = scalar_select %p111, %s112, %s113
      %p117 = pneg %p111
      %p118 = scmp.eq.s32.totalorder %s13, 1
      %p119 = por %p117, %p118
      %p120 = scmp.ne.s32.totalorder %s112, %s115
      %p121 = scmp.eq.s32.totalorder %s13, 0
      %p122 = por %p120, %p121
      %p123 = scmp.ne.s32.totalorder %s112, %s115
      %p124 = scmp.eq.s32.totalorder %s18, 1
      %p125 = por %p123, %p124
      %p126 = scmp.ne.s32.totalorder %s115, %s116
      %p127 = scmp.eq.s32.totalorder %s18, 0
      %p128 = por %p126, %p127
      %p129 = scmp.ne.s32.totalorder %s115, %s116
      %p130 = scmp.eq.s32.totalorder %s19, 1
      %p131 = por %p129, %p130
      %p133 = scmp.ne.s32.totalorder %s116, %s132
      %p134 = scmp.eq.s32.totalorder %s19, 0
      %p135 = por %p133, %p134
      %p136 = scmp.le.s32.totalorder 1, %s13
      %p137 = scmp.lt.s32.totalorder %s13, 3
      %p138 = pnand %p136, %p137
      %p139 = pneg %p138
      // Predicated region
      $region9: #{cfnet_forward.1} parent=5 // pred_check
        _
      $region10: #{cfnet_forward.1} parent=5 // pred_check_branch
        %141 = sbr.rel (%p138) target = $region12
      $region11: #{cfnet_forward.1} parent=5 // pred_region
        %s142 = ssub.s32 %s13, 1
        // Predicated region
        $region13: #{cfnet_forward.1} parent=11 // pred_check
          %p143 = pneg %p60
        $region14: #{cfnet_forward.1} parent=11 // pred_check_branch
          %145 = sbr.rel (%p143) target = $region16
        $region15: #{cfnet_forward.1} parent=11 // pred_region
          _
        $region16: #{cfnet_forward.1} parent=11 // pred_fallthru
          _
        // Predicated region
        $region17: #{cfnet_forward.1} parent=11 // pred_check
          %p146 = pneg %p81
        $region18: #{cfnet_forward.1} parent=11 // pred_check_branch
          %148 = sbr.rel (%p146) target = $region20
        $region19: #{cfnet_forward.1} parent=11 // pred_region
          _
        $region20: #{cfnet_forward.1} parent=11 // pred_fallthru
          _
        // Predicated region
        $region21: #{cfnet_forward.1} parent=11 // pred_check
          %p149 = pneg %p102
        $region22: #{cfnet_forward.1} parent=11 // pred_check_branch
          %151 = sbr.rel (%p149) target = $region24
        $region23: #{cfnet_forward.1} parent=11 // pred_region
          _
        $region24: #{cfnet_forward.1} parent=11 // pred_fallthru
          _
      $region12: #{cfnet_forward.1} parent=5 // pred_fallthru
        _
      %p152 = scmp.lt.s32.totalorder %s13, 2
      // Predicated region
      $region25: #{cfnet_forward.1} parent=5 // pred_check
        %p153 = pneg %p152
      $region26: #{cfnet_forward.1} parent=5 // pred_check_branch
        %155 = sbr.rel (%p153) target = $region28
      $region27: #{cfnet_forward.1} parent=5 // pred_region
        // Predicated region
        $region29: #{cfnet_forward.1} parent=27 // pred_check
          %p156 = pneg %p33
        $region30: #{cfnet_forward.1} parent=27 // pred_check_branch
          %158 = sbr.rel (%p156) target = $region32
        $region31: #{cfnet_forward.1} parent=27 // pred_region
          %s159 = smul.u32 2, %s13
          %p160 = scmp.lt.s32.totalorder %s159, 3
          %s161 = scalar_select %p160, %s159, 3
          %s162 = smul.addr %s161, 2
          %s163 = scalar_lea.vmem %s0, %s162
          %s164 = smul.u32 2, %s13
        $region32: #{cfnet_forward.1} parent=27 // pred_fallthru
          _
      $region28: #{cfnet_forward.1} parent=5 // pred_fallthru
        _
      %p165 = scmp.le.s32.totalorder 1, %s13
      %p166 = scmp.lt.s32.totalorder %s13, 3
      %p167 = pnand %p165, %p166
      %p168 = pneg %p167
      // Predicated region
      $region33: #{cfnet_forward.1} parent=5 // pred_check
        _
      $region34: #{cfnet_forward.1} parent=5 // pred_check_branch
        %170 = sbr.rel (%p167) target = $region36
      $region35: #{cfnet_forward.1} parent=5 // pred_region
        %s171 = ssub.s32 %s13, 1
        %s172 = smul.u32 2, %s18
        %p173 = scmp.lt.s32.totalorder %s172, 3
        %s174 = scalar_select %p173, %s172, 3
        %s175 = smul.addr %s174, 2
        %s176 = scalar_lea.vmem %s0, %s175
        %p177 = pneg %p39
        %p178 = pneg %p36
        %p179 = pneg %p60
        %p180 = pneg %p57
        %p181 = pneg %p81
        %p182 = pneg %p78
        %p183 = pneg %p102
        %p184 = pneg %p99
        %p185 = pneg %p128
        %p186 = pneg %p125
        %s187 = sand.u32 %s115, 1
        %s188 = scalar_lea.sflag [#allocation3], %s187
        %s189 = sand.u32 %s115, 1
        %s190 = smul.addr %s189, 2
        %s191 = scalar_lea.vmem [#allocation2], %s190
        %s192 = smul.u32 2, %s18
        %p193 = scmp.lt.s32.totalorder %s192, 3
        %s194 = scalar_select %p193, %s192, 3
        %s195 = smul.addr %s194, 2
        %s196 = scalar_lea.vmem %s0, %s195
        %s197 = smul.u32 2, %s18
        %s198 = smul.u32 2, %s18
        %v199 = vld [vmem:[%s196] sm:$0xf]
        %v200 = vadd.s32 %v199, 32
        %v201 = vlaneseq
        %v202 = vshrl.u32 %v201, 7
        %v203 = vadd.s32 %v202, 8
        %v204 = vadd.s32 %v202, 16
        %v205 = vadd.s32 %v202, 24
        %v206 = vadd.s32 %v202, 32
        %v207 = vadd.s32 %v202, 40
        %v208 = vadd.s32 %v202, 48
        %v209 = vlaneseq
        %v210 = vshrl.u32 %v209, 7
        %v211 = vsub.s32 0, %v210
        %v212 = vrot.slane %v199, %v211
        %v213 = vlaneseq
        %v214 = vshrl.u32 %v213, 7
        %v215 = vsub.s32 2, %v214
        %v216 = vrot.slane %v199, %v215
        %v217 = vlaneseq
        %v218 = vshrl.u32 %v217, 7
        %v219 = vsub.s32 0, %v218
        %v220 = vrot.slane %v212, %v219
        %v221 = vlaneseq
        %v222 = vshrl.u32 %v221, 7
        %v223 = vsub.s32 0, %v222
        %v224 = vrot.slane %v216, %v223
        %vm225 = vcmp.eq.s32.totalorder %v202, %v220
        %vm226 = vcmp.eq.s32.totalorder %v202, %v224
        %vm227 = vcmp.eq.s32.totalorder %v203, %v220
        %vm228 = vcmp.eq.s32.totalorder %v203, %v224
        %vm229 = vcmp.eq.s32.totalorder %v204, %v220
        %vm230 = vcmp.eq.s32.totalorder %v204, %v224
        %vm231 = vcmp.eq.s32.totalorder %v205, %v220
        %vm232 = vcmp.eq.s32.totalorder %v205, %v224
        %vm233 = vcmp.eq.s32.totalorder %v206, %v220
        %vm234 = vcmp.eq.s32.totalorder %v206, %v224
        %vm235 = vcmp.eq.s32.totalorder %v207, %v220
        %vm236 = vcmp.eq.s32.totalorder %v207, %v224
        %vm237 = vcmp.eq.s32.totalorder %v208, %v220
        %vm238 = vcmp.eq.s32.totalorder %v208, %v224
        %v239 = vlaneseq
        %v240 = vshrl.u32 %v239, 7
        %v241 = vsub.s32 1, %v240
        %v242 = vrot.slane %v200, %v241
        %v243 = vlaneseq
        %v244 = vshrl.u32 %v243, 7
        %v245 = vsub.s32 3, %v244
        %v246 = vrot.slane %v200, %v245
        %v247 = vlaneseq
        %v248 = vshrl.u32 %v247, 7
        %v249 = vsub.s32 1, %v248
        %v250 = vrot.slane %v242, %v249
        %v251 = vlaneseq
        %v252 = vshrl.u32 %v251, 7
        %v253 = vsub.s32 1, %v252
        %v254 = vrot.slane %v246, %v253
        %vm255 = vcmp.eq.s32.totalorder %v202, %v250
        %vm256 = vcmp.eq.s32.totalorder %v202, %v254
        %vm257 = vcmp.eq.s32.totalorder %v203, %v250
        %vm258 = vcmp.eq.s32.totalorder %v203, %v254
        %vm259 = vcmp.eq.s32.totalorder %v204, %v250
        %vm260 = vcmp.eq.s32.totalorder %v204, %v254
        %vm261 = vcmp.eq.s32.totalorder %v205, %v250
        %vm262 = vcmp.eq.s32.totalorder %v205, %v254
        %vm263 = vcmp.eq.s32.totalorder %v206, %v250
        %vm264 = vcmp.eq.s32.totalorder %v206, %v254
        %vm265 = vcmp.eq.s32.totalorder %v207, %v250
        %vm266 = vcmp.eq.s32.totalorder %v207, %v254
        %vm267 = vcmp.eq.s32.totalorder %v208, %v250
        %vm268 = vcmp.eq.s32.totalorder %v208, %v254
        %vm269 = vmor %vm225, %vm255
        %vm270 = vmor %vm226, %vm256
        %vm271 = vmor %vm227, %vm257
        %vm272 = vmor %vm228, %vm258
        %vm273 = vmor %vm229, %vm259
        %vm274 = vmor %vm230, %vm260
        %vm275 = vmor %vm231, %vm261
        %vm276 = vmor %vm232, %vm262
        %vm277 = vmor %vm233, %vm263
        %vm278 = vmor %vm234, %vm264
        %vm279 = vmor %vm235, %vm265
        %vm280 = vmor %vm236, %vm266
        %vm281 = vmor %vm237, %vm267
        %vm282 = vmor %vm238, %vm268
        %v283 = vsel %vm269, 1, 0
        %v284 = vsel %vm270, 1, 0
        %v285 = vsel %vm271, 1, 0
        %v286 = vsel %vm272, 1, 0
        %v287 = vsel %vm273, 1, 0
        %v288 = vsel %vm274, 1, 0
        %v289 = vsel %vm275, 1, 0
        %v290 = vsel %vm276, 1, 0
        %v291 = vsel %vm277, 1, 0
        %v292 = vsel %vm278, 1, 0
        %v293 = vsel %vm279, 1, 0
        %v294 = vsel %vm280, 1, 0
        %v295 = vsel %vm281, 1, 0
        %v296 = vsel %vm282, 1, 0
        %v297 = vcvt.s32.f32 %v283
        %v298 = vcvt.s32.f32 %v284
        %v299 = vcvt.s32.f32 %v285
        %v300 = vcvt.s32.f32 %v286
        %v301 = vcvt.s32.f32 %v287
        %v302 = vcvt.s32.f32 %v288
        %v303 = vcvt.s32.f32 %v289
        %v304 = vcvt.s32.f32 %v290
        %v305 = vcvt.s32.f32 %v291
        %v306 = vcvt.s32.f32 %v292
        %v307 = vcvt.s32.f32 %v293
        %v308 = vcvt.s32.f32 %v294
        %v309 = vcvt.s32.f32 %v295
        %v310 = vcvt.s32.f32 %v296
        %v311 = vld [vmem:[%s1] sm:$0xff]
        %v312 = vld [vmem:[%s1 + $0x8] sm:$0xff]
        %v313 = vld [vmem:[%s1 + $0x10] sm:$0xff]
        %v314 = vld [vmem:[%s1 + $0x18] sm:$0xff]
        %v315 = vld [vmem:[%s1 + $0x20] sm:$0xff]
        %v316 = vld [vmem:[%s1 + $0x28] sm:$0xff]
        %v317 = vld [vmem:[%s1 + $0x30] sm:$0xff]
        %v318 = vld [vmem:[%s1 + $0x38] sm:$0xff]
        %v319 = vld [vmem:[%s1 + $0x40] sm:$0xff]
        %v320 = vld [vmem:[%s1 + $0x48] sm:$0xff]
        %v321 = vld [vmem:[%s1 + $0x50] sm:$0xff]
        %v322 = vld [vmem:[%s1 + $0x58] sm:$0xff]
        %v323 = vld [vmem:[%s1 + $0x60] sm:$0xff]
        %v324 = vld [vmem:[%s1 + $0x68] sm:$0xff]
        %v325 = vld [vmem:[%s1 + $0x70] sm:$0xff]
        %v326 = vld [vmem:[%s1 + $0x78] sm:$0xff]
        %vm327 = vcmask 457728
        %v329 = vsel %vm327, %v311, 0
        %v332 = vsel %vm327, %v312, 0
        %v335 = vsel %vm327, %v313, 0
        %v338 = vsel %vm327, %v314, 0
        %v341 = vsel %vm327, %v315, 0
        %v344 = vsel %vm327, %v316, 0
        %v347 = vsel %vm327, %v317, 0
        %v350 = vsel %vm327, %v318, 0
        %v353 = vsel %vm327, %v319, 0
        %v356 = vsel %vm327, %v320, 0
        %v359 = vsel %vm327, %v321, 0
        %v362 = vsel %vm327, %v322, 0
        %v365 = vsel %vm327, %v323, 0
        %v368 = vsel %vm327, %v324, 0
        %v371 = vsel %vm327, %v325, 0
        %v374 = vsel %vm327, %v326, 0
        %376 = vmatprep.subr.mxu0 0.0
        %377 = vmatpush1.msra.mxu0 0.0
        %378 = vmatprep.subr.mxu0 0.0
        %379 = vmatpush1.msra.mxu0 0.0
        %380 = vmatprep.subr.mxu0 0.0
        %381 = vmatpush1.msra.mxu0 0.0
        %382 = vmatprep.subr.mxu0 0.0
        %383 = vmatpush1.msra.mxu0 0.0
        %384 = vmatprep.subr.mxu0 0.0
        %385 = vmatpush1.msra.mxu0 0.0
        %386 = vmatprep.subr.mxu0 0.0
        %387 = vmatpush1.msra.mxu0 0.0
        %388 = vmatprep.subr.mxu0 0.0
        %389 = vmatpush1.msra.mxu0 0.0
        %390 = vmatprep.subr.mxu0 0.0
        %391 = vmatpush1.msra.mxu0 0.0
        %392 = vmatprep.subr.mxu0 0.0
        %393 = vmatpush1.msra.mxu0 0.0
        %394 = vmatprep.subr.mxu0 %v310
        %395 = vmatpush1.msra.mxu0 %v309
        %396 = vmatprep.subr.mxu0 %v308
        %397 = vmatpush1.msra.mxu0 %v307
        %398 = vmatprep.subr.mxu0 %v306
        %399 = vmatpush1.msra.mxu0 %v305
        %400 = vmatprep.subr.mxu0 %v304
        %401 = vmatpush1.msra.mxu0 %v303
        %402 = vmatprep.subr.mxu0 %v302
        %403 = vmatpush1.msra.mxu0 %v301
        %404 = vmatprep.subr.mxu0 %v300
        %405 = vmatpush1.msra.mxu0 %v299
        %406 = vmatprep.subr.mxu0 %v298
        %407 = vmatpush1.msra.mxu0 %v297
        %408 = vmatprep.subr.mxu0 0.0
        %409 = vmatpush2.msra.mxu0 0.0
        %410 = vmatprep.subr.mxu0 0.0
        %411 = vmatpush2.msra.mxu0 0.0
        %412 = vmatprep.subr.mxu0 0.0
        %413 = vmatpush2.msra.mxu0 0.0
        %414 = vmatprep.subr.mxu0 0.0
        %415 = vmatpush2.msra.mxu0 0.0
        %416 = vmatprep.subr.mxu0 0.0
        %417 = vmatpush2.msra.mxu0 0.0
        %418 = vmatprep.subr.mxu0 0.0
        %419 = vmatpush2.msra.mxu0 0.0
        %420 = vmatprep.subr.mxu0 0.0
        %421 = vmatpush2.msra.mxu0 0.0
        %422 = vmatprep.subr.mxu0 0.0
        %423 = vmatpush2.msra.mxu0 0.0
        %424 = vmatprep.subr.mxu0 0.0
        %425 = vmatpush2.msra.mxu0 0.0
        %426 = vmatprep.subr.mxu0 0.0
        %427 = vmatpush2.msra.mxu0 0.0
        %428 = vmatprep.subr.mxu0 0.0
        %429 = vmatpush2.msra.mxu0 0.0
        %430 = vmatprep.subr.mxu0 0.0
        %431 = vmatpush2.msra.mxu0 0.0
        %432 = vmatprep.subr.mxu0 0.0
        %433 = vmatpush2.msra.mxu0 0.0
        %434 = vmatprep.subr.mxu0 0.0
        %435 = vmatpush2.msra.mxu0 0.0
        %436 = vmatprep.subr.mxu0 0.0
        %437 = vmatpush2.msra.mxu0 0.0
        %438 = vmatprep.subr.mxu0 0.0
        %439 = vmatpush2.msra.mxu0 0.0
        %440 = vmatprep.mubr.f32.mxu0 0.0
        %441 = vmatmul.mubr.f32.gmra.mxu0 %v329
        %v442 = vpop.f32.mrf.mxu0
        %v443 = vadd.f32 0.0, %v442
        %v444 = vpop.f32.mrf.mxu0
        %v445 = vadd.f32 0.0, %v444
        %446 = vmatprep.mubr.f32.mxu0 0.0
        %447 = vmatmul.mubr.f32.gmra.mxu0 %v332
        %v448 = vpop.f32.mrf.mxu0
        %v449 = vadd.f32 0.0, %v448
        %v450 = vpop.f32.mrf.mxu0
        %v451 = vadd.f32 0.0, %v450
        %452 = vmatprep.mubr.f32.mxu0 0.0
        %453 = vmatmul.mubr.f32.gmra.mxu0 %v335
        %v454 = vpop.f32.mrf.mxu0
        %v455 = vadd.f32 0.0, %v454
        %v456 = vpop.f32.mrf.mxu0
        %v457 = vadd.f32 0.0, %v456
        %458 = vmatprep.mubr.f32.mxu0 0.0
        %459 = vmatmul.mubr.f32.gmra.mxu0 %v338
        %v460 = vpop.f32.mrf.mxu0
        %v461 = vadd.f32 0.0, %v460
        %v462 = vpop.f32.mrf.mxu0
        %v463 = vadd.f32 0.0, %v462
        %464 = vmatprep.mubr.f32.mxu0 0.0
        %465 = vmatmul.mubr.f32.gmra.mxu0 %v341
        %v466 = vpop.f32.mrf.mxu0
        %v467 = vadd.f32 0.0, %v466
        %v468 = vpop.f32.mrf.mxu0
        %v469 = vadd.f32 0.0, %v468
        %470 = vmatprep.mubr.f32.mxu0 0.0
        %471 = vmatmul.mubr.f32.gmra.mxu0 %v344
        %v472 = vpop.f32.mrf.mxu0
        %v473 = vadd.f32 0.0, %v472
        %v474 = vpop.f32.mrf.mxu0
        %v475 = vadd.f32 0.0, %v474
        %476 = vmatprep.mubr.f32.mxu0 0.0
        %477 = vmatmul.mubr.f32.gmra.mxu0 %v347
        %v478 = vpop.f32.mrf.mxu0
        %v479 = vadd.f32 0.0, %v478
        %v480 = vpop.f32.mrf.mxu0
        %v481 = vadd.f32 0.0, %v480
        %482 = vmatprep.mubr.f32.mxu0 0.0
        %483 = vmatmul.mubr.f32.gmra.mxu0 %v350
        %v484 = vpop.f32.mrf.mxu0
        %v485 = vadd.f32 0.0, %v484
        %v486 = vpop.f32.mrf.mxu0
        %v487 = vadd.f32 0.0, %v486
        %488 = vmatprep.mubr.f32.mxu0 0.0
        %489 = vmatmul.mubr.f32.gmra.mxu0 %v353
        %v490 = vpop.f32.mrf.mxu0
        %v491 = vadd.f32 0.0, %v490
        %v492 = vpop.f32.mrf.mxu0
        %v493 = vadd.f32 0.0, %v492
        %494 = vmatprep.mubr.f32.mxu0 0.0
        %495 = vmatmul.mubr.f32.gmra.mxu0 %v356
        %v496 = vpop.f32.mrf.mxu0
        %v497 = vadd.f32 0.0, %v496
        %v498 = vpop.f32.mrf.mxu0
        %v499 = vadd.f32 0.0, %v498
        %500 = vmatprep.mubr.f32.mxu0 0.0
        %501 = vmatmul.mubr.f32.gmra.mxu0 %v359
        %v502 = vpop.f32.mrf.mxu0
        %v503 = vadd.f32 0.0, %v502
        %v504 = vpop.f32.mrf.mxu0
        %v505 = vadd.f32 0.0, %v504
        %506 = vmatprep.mubr.f32.mxu0 0.0
        %507 = vmatmul.mubr.f32.gmra.mxu0 %v362
        %v508 = vpop.f32.mrf.mxu0
        %v509 = vadd.f32 0.0, %v508
        %v510 = vpop.f32.mrf.mxu0
        %v511 = vadd.f32 0.0, %v510
        %512 = vmatprep.mubr.f32.mxu0 0.0
        %513 = vmatmul.mubr.f32.gmra.mxu0 %v365
        %v514 = vpop.f32.mrf.mxu0
        %v515 = vadd.f32 0.0, %v514
        %v516 = vpop.f32.mrf.mxu0
        %v517 = vadd.f32 0.0, %v516
        %518 = vmatprep.mubr.f32.mxu0 0.0
        %519 = vmatmul.mubr.f32.gmra.mxu0 %v368
        %v520 = vpop.f32.mrf.mxu0
        %v521 = vadd.f32 0.0, %v520
        %v522 = vpop.f32.mrf.mxu0
        %v523 = vadd.f32 0.0, %v522
        %524 = vmatprep.mubr.f32.mxu0 0.0
        %525 = vmatmul.mubr.f32.gmra.mxu0 %v371
        %v526 = vpop.f32.mrf.mxu0
        %v527 = vadd.f32 0.0, %v526
        %v528 = vpop.f32.mrf.mxu0
        %v529 = vadd.f32 0.0, %v528
        %530 = vmatprep.mubr.f32.mxu0 0.0
        %531 = vmatmul.mubr.f32.gmra.mxu0 %v374
        %v532 = vpop.f32.mrf.mxu0
        %v533 = vadd.f32 0.0, %v532
        %v534 = vpop.f32.mrf.mxu0
        %v535 = vadd.f32 0.0, %v534
        %536 = vdwg.mxu0
        %v537 = vmax.f32 %v443, 0.0
        %v538 = vmax.f32 %v445, 0.0
        %v539 = vmax.f32 %v449, 0.0
        %v540 = vmax.f32 %v451, 0.0
        %v541 = vmax.f32 %v455, 0.0
        %v542 = vmax.f32 %v457, 0.0
        %v543 = vmax.f32 %v461, 0.0
        %v544 = vmax.f32 %v463, 0.0
        %v545 = vmax.f32 %v491, 0.0
        %v546 = vmax.f32 %v493, 0.0
        %v547 = vmax.f32 %v497, 0.0
        %v548 = vmax.f32 %v499, 0.0
        %v549 = vmax.f32 %v503, 0.0
        %v550 = vmax.f32 %v505, 0.0
        %v551 = vmax.f32 %v509, 0.0
        %v552 = vmax.f32 %v511, 0.0
        %v553 = vmul.f32 %v537, %v545
        %v554 = vmul.f32 %v538, %v546
        %v555 = vmul.f32 %v539, %v547
        %v556 = vmul.f32 %v540, %v548
        %v557 = vmul.f32 %v541, %v549
        %v558 = vmul.f32 %v542, %v550
        %v559 = vmul.f32 %v543, %v551
        %v560 = vmul.f32 %v544, %v552
        %v561 = vadd.f32 %v467, %v515
        %v562 = vadd.f32 %v469, %v517
        %v563 = vadd.f32 %v473, %v521
        %v564 = vadd.f32 %v475, %v523
        %v565 = vadd.f32 %v479, %v527
        %v566 = vadd.f32 %v481, %v529
        %v567 = vadd.f32 %v485, %v533
        %v568 = vadd.f32 %v487, %v535
        %v569 = vmax.f32 %v561, 0.0
        %v570 = vmax.f32 %v562, 0.0
        %v571 = vmax.f32 %v563, 0.0
        %v572 = vmax.f32 %v564, 0.0
        %v573 = vmax.f32 %v565, 0.0
        %v574 = vmax.f32 %v566, 0.0
        %v575 = vmax.f32 %v567, 0.0
        %v576 = vmax.f32 %v568, 0.0
        %v577 = vld [vmem:[%s3] sm:$0xff]
        %v578 = vld [vmem:[%s3 + $0x8] sm:$0xff]
        %v579 = vld [vmem:[%s3 + $0x10] sm:$0xff]
        %v580 = vld [vmem:[%s3 + $0x18] sm:$0xff]
        %v581 = vld [vmem:[%s3 + $0x20] sm:$0xff]
        %v582 = vld [vmem:[%s3 + $0x28] sm:$0xff]
        %v583 = vld [vmem:[%s3 + $0x30] sm:$0xff]
        %v584 = vld [vmem:[%s3 + $0x38] sm:$0xff]
        %v585 = vld [vmem:[%s3 + $0x40] sm:$0x1]
        %v586 = vld [vmem:[%s2] sm:$0xff]
        %v587 = vld [vmem:[%s2 + $0x8] sm:$0xff]
        %589 = vset.pattern.permute.xlu0 0
        %590 = vperm.xlu0 %589, %v577
        %v591 = vpop.permute.xlu0 %590
        %594 = vset.pattern.permute.xlu0 0
        %595 = vperm.xlu0 %594, %v578
        %v596 = vpop.permute.xlu0 %595
        %vm598 = vcmask 261120
        %v600 = vsel %vm598, %v586, 0
        %v603 = vsel %vm598, %v587, 0
        %605 = vmatprep.subr.mxu0 0.0
        %606 = vmatpush1.msra.mxu0 0.0
        %607 = vmatprep.subr.mxu0 0.0
        %608 = vmatpush1.msra.mxu0 0.0
        %609 = vmatprep.subr.mxu0 0.0
        %610 = vmatpush1.msra.mxu0 0.0
        %611 = vmatprep.subr.mxu0 0.0
        %612 = vmatpush1.msra.mxu0 0.0
        %613 = vmatprep.subr.mxu0 0.0
        %614 = vmatpush1.msra.mxu0 0.0
        %615 = vmatprep.subr.mxu0 0.0
        %616 = vmatpush1.msra.mxu0 0.0
        %617 = vmatprep.subr.mxu0 0.0
        %618 = vmatpush1.msra.mxu0 0.0
        %619 = vmatprep.subr.mxu0 0.0
        %620 = vmatpush1.msra.mxu0 0.0
        %621 = vmatprep.subr.mxu0 0.0
        %622 = vmatpush1.msra.mxu0 0.0
        %623 = vmatprep.subr.mxu0 0.0
        %624 = vmatpush1.msra.mxu0 0.0
        %625 = vmatprep.subr.mxu0 0.0
        %626 = vmatpush1.msra.mxu0 0.0
        %627 = vmatprep.subr.mxu0 0.0
        %628 = vmatpush1.msra.mxu0 0.0
        %629 = vmatprep.subr.mxu0 %v576
        %630 = vmatpush1.msra.mxu0 %v575
        %631 = vmatprep.subr.mxu0 %v574
        %632 = vmatpush1.msra.mxu0 %v573
        %633 = vmatprep.subr.mxu0 %v572
        %634 = vmatpush1.msra.mxu0 %v571
        %635 = vmatprep.subr.mxu0 %v570
        %636 = vmatpush1.msra.mxu0 %v569
        %637 = vmatprep.subr.mxu0 0.0
        %638 = vmatpush2.msra.mxu0 0.0
        %639 = vmatprep.subr.mxu0 0.0
        %640 = vmatpush2.msra.mxu0 0.0
        %641 = vmatprep.subr.mxu0 0.0
        %642 = vmatpush2.msra.mxu0 0.0
        %643 = vmatprep.subr.mxu0 0.0
        %644 = vmatpush2.msra.mxu0 0.0
        %645 = vmatprep.subr.mxu0 0.0
        %646 = vmatpush2.msra.mxu0 0.0
        %647 = vmatprep.subr.mxu0 0.0
        %648 = vmatpush2.msra.mxu0 0.0
        %649 = vmatprep.subr.mxu0 0.0
        %650 = vmatpush2.msra.mxu0 0.0
        %651 = vmatprep.subr.mxu0 0.0
        %652 = vmatpush2.msra.mxu0 0.0
        %653 = vmatprep.subr.mxu0 0.0
        %654 = vmatpush2.msra.mxu0 0.0
        %655 = vmatprep.subr.mxu0 0.0
        %656 = vmatpush2.msra.mxu0 0.0
        %657 = vmatprep.subr.mxu0 0.0
        %658 = vmatpush2.msra.mxu0 0.0
        %659 = vmatprep.subr.mxu0 0.0
        %660 = vmatpush2.msra.mxu0 0.0
        %661 = vmatprep.subr.mxu0 0.0
        %662 = vmatpush2.msra.mxu0 0.0
        %663 = vmatprep.subr.mxu0 0.0
        %664 = vmatpush2.msra.mxu0 0.0
        %665 = vmatprep.subr.mxu0 0.0
        %666 = vmatpush2.msra.mxu0 0.0
        %667 = vmatprep.subr.mxu0 0.0
        %668 = vmatpush2.msra.mxu0 0.0
        %669 = vmatprep.mubr.f32.mxu0 0.0
        %670 = vmatmul.mubr.f32.gmra.mxu0 %v600
        %v671 = vpop.f32.mrf.mxu0
        %v672 = vadd.f32 %v591, %v671
        %v673 = vpop.f32.mrf.mxu0
        %v674 = vadd.f32 %v591, %v673
        %675 = vmatprep.mubr.f32.mxu0 0.0
        %676 = vmatmul.mubr.f32.gmra.mxu0 %v603
        %v677 = vpop.f32.mrf.mxu0
        %v678 = vadd.f32 %v596, %v677
        %v679 = vpop.f32.mrf.mxu0
        %v680 = vadd.f32 %v596, %v679
        %681 = vdwg.mxu0
        %v682 = vmax.f32 %v672, 0.0
        %v683 = vmax.f32 %v674, 0.0
        %v684 = vmax.f32 %v678, 0.0
        %v685 = vmax.f32 %v680, 0.0
        %687 = vset.pattern.permute.xlu0 0
        %688 = vperm.xlu0 %687, %v579
        %v689 = vpop.permute.xlu0 %688
        %692 = vset.pattern.permute.xlu0 0
        %693 = vperm.xlu0 %692, %v580
        %v694 = vpop.permute.xlu0 %693
        %697 = vset.pattern.permute.xlu0 0
        %698 = vperm.xlu0 %697, %v581
        %v699 = vpop.permute.xlu0 %698
        %702 = vset.pattern.permute.xlu0 0
        %703 = vperm.xlu0 %702, %v582
        %v704 = vpop.permute.xlu0 %703
        %v706 = vmul.f32 %v553, %v689
        %v707 = vmul.f32 %v554, %v689
        %v708 = vmul.f32 %v555, %v694
        %v709 = vmul.f32 %v556, %v694
        %v710 = vmul.f32 %v557, %v699
        %v711 = vmul.f32 %v558, %v699
        %v712 = vmul.f32 %v559, %v704
        %v713 = vmul.f32 %v560, %v704
        %v714 = vadd.f32 %v706, %v708
        %v715 = vadd.f32 %v714, %v710
        %v716 = vadd.f32 %v715, %v712
        %v717 = vrot.slane %v716, 4
        %v718 = vadd.f32 %v716, %v717
        %v719 = vrot.slane %v718, 2
        %v720 = vadd.f32 %v718, %v719
        %v721 = vrot.slane %v720, 1
        %v722 = vadd.f32 %v720, %v721
        %v723 = vadd.f32 %v707, %v709
        %v724 = vadd.f32 %v723, %v711
        %v725 = vadd.f32 %v724, %v713
        %v726 = vrot.slane %v725, 4
        %v727 = vadd.f32 %v725, %v726
        %v728 = vrot.slane %v727, 2
        %v729 = vadd.f32 %v727, %v728
        %v730 = vrot.slane %v729, 1
        %v731 = vadd.f32 %v729, %v730
        %733 = vset.pattern.permute.xlu0 0
        %734 = vperm.xlu0 %733, %v583
        %v735 = vpop.permute.xlu0 %734
        %738 = vset.pattern.permute.xlu0 0
        %739 = vperm.xlu0 %738, %v584
        %v740 = vpop.permute.xlu0 %739
        %v742 = vmul.f32 %v682, %v735
        %v743 = vmul.f32 %v683, %v735
        %v744 = vmul.f32 %v684, %v740
        %v745 = vmul.f32 %v685, %v740
        %v746 = vadd.f32 %v742, %v744
        %v747 = vrot.slane %v746, 4
        %v748 = vadd.f32 %v746, %v747
        %v749 = vrot.slane %v748, 2
        %v750 = vadd.f32 %v748, %v749
        %v751 = vrot.slane %v750, 1
        %v752 = vadd.f32 %v750, %v751
        %v753 = vadd.f32 %v743, %v745
        %v754 = vrot.slane %v753, 4
        %v755 = vadd.f32 %v753, %v754
        %v756 = vrot.slane %v755, 2
        %v757 = vadd.f32 %v755, %v756
        %v758 = vrot.slane %v757, 1
        %v759 = vadd.f32 %v757, %v758
        %v760 = vadd.f32 %v722, %v752
        %v761 = vadd.f32 %v731, %v759
        %763 = vset.pattern.permute.xlu0 0
        %764 = vperm.xlu0 %763, %v585
        %v765 = vpop.permute.xlu0 %764
        %v767 = vadd.f32 %v760, %v765
        %v768 = vadd.f32 %v761, %v765
        %v769 = vsub.f32 0.0, %v767
        %v770 = vsub.f32 0.0, %v768
        %v771 = vmul.f32 %v769, 1.442695
        %v772 = vpow.pop %v771
        %v773 = vmul.f32 %v770, 1.442695
        %v774 = vpow.pop %v773
        %v775 = vadd.f32 %v772, 1.0
        %v776 = vadd.f32 %v774, 1.0
        %v777 = vrcp.pop %v775
        %v778 = vmul.f32 1.0, %v777
        %v779 = vrcp.pop %v776
        %v780 = vmul.f32 1.0, %v779
        %v783 = vcombine.low %v778, %v780
        %v785 = vunpack.c.l.s4 1966171168
        %v786 = vunpack.c.0.s8 %v785
        %v787 = vlaneseq
        %v788 = vshrl.u32 %v787, 7
        %v789 = vsub.s32 %v786, %v788
        %v790 = vrot.slane %v783, %v789
        %v792 = vunpack.c.l.s4 1966171168
        %v793 = vunpack.c.0.s8 %v792
        %v794 = vlaneseq
        %v795 = vshrl.u32 %v794, 7
        %v796 = vsub.s32 %v793, %v795
        %v797 = vrot.slane %v790, %v796
        %v799 = vlaneseq
        %vm800 = vcmp.ge.s32.totalorder %v799, 0
        %vm801 = vcmp.lt.s32.totalorder %v799, 256
        %vm802 = vmand %vm800, %vm801
        %803 = vst.msk [vmem:[%s191] sm:$0x3] %vm802, %v797
        %s804 = sand.u32 %s115, 1
        %s805 = scalar_lea.sflag [#allocation3], %s804
        %s806 = sand.u32 %s115, 1
        %s807 = smul.addr %s806, 2
        %s808 = scalar_lea.vmem [#allocation2], %s807
        // Predicated region
        $region37: #{cfnet_forward.1} parent=35 // pred_check
          %p809 = pneg %p125
        $region38: #{cfnet_forward.1} parent=35 // pred_check_branch
          %811 = sbr.rel (%p809) target = $region40
        $region39: #{cfnet_forward.1} parent=35 // pred_region
          %s812 = smul.u32 2, %s18
          %s814 = ssub.s32 32, 32
          %815 = vsyncadd %s805, %s814
          %s816 = smul.addr %s812, 16
          %s817 = scalar_lea.hbm %s4, %s816
          %s819 = sshll.u32 %s808, 4
          %s820 = int_to_ptr.vmem [resolvable:$true] %s819
          %822 = dma.vmem_to_hbm [thread:$0]  %s820, 32, %s817, %s805
        $region40: #{cfnet_forward.1} parent=35 // pred_fallthru
          _
      $region36: #{cfnet_forward.1} parent=5 // pred_fallthru
        _
      %p823 = scmp.le.s32.totalorder 2, %s13
      // Predicated region
      $region41: #{cfnet_forward.1} parent=5 // pred_check
        %p824 = pneg %p823
      $region42: #{cfnet_forward.1} parent=5 // pred_check_branch
        %826 = sbr.rel (%p824) target = $region44
      $region43: #{cfnet_forward.1} parent=5 // pred_region
        %s827 = ssub.s32 %s13, 2
        // Predicated region
        $region45: #{cfnet_forward.1} parent=43 // pred_check
          %p828 = pneg %p131
        $region46: #{cfnet_forward.1} parent=43 // pred_check_branch
          %830 = sbr.rel (%p828) target = $region48
        $region47: #{cfnet_forward.1} parent=43 // pred_region
          %s831 = sand.u32 %s116, 1
          %s832 = scalar_lea.sflag [#allocation3], %s831
          %s833 = sand.u32 %s116, 1
          %s834 = smul.addr %s833, 2
          %s835 = scalar_lea.vmem [#allocation2], %s834
          %836 = dma.done %s832, 32
        $region48: #{cfnet_forward.1} parent=43 // pred_fallthru
          _
      $region44: #{cfnet_forward.1} parent=5 // pred_fallthru
        _
    $region6: #{cfnet_forward.1} parent=1 // loop_footer
      %s17 = sadd.s32 1, %s13
    $region7: #{cfnet_forward.1} parent=1 // loop_footer_branch
      %12 = sbr.rel target = $region3
    $region8: #{cfnet_forward.1} parent=1 // loop_exit
      _
    %837 = vsyncpa [#allocation3], 1
    %s838 = scalar_lea.sflag [#allocation3], 1
    %839 = vsyncpa %s838, 1

</llo_original>
